<compile_context>
chip_gen: v5e
topology: v5e:2x2
jax: 0.10.0
libtpu: 0.0.40
codegen_flags: <defaults>
</compile_context>

<pallas_src>
import jax
import jax.numpy as jnp
from jax.experimental import pallas as pl
from jax.experimental.pallas import tpu as pltpu


def _round_up(x, m):
    return ((x + m - 1) // m) * m


def _cdiv(a, b):
    return -(-a // b)


def actor_kernel(x_ref, w1_ref, b1_ref, w2_ref, b2_ref, o_ref):
    # x_ref : [G*IN,  TB] f32 VMEM  (G batch groups on sublanes, batch on lanes)
    # w1_ref: [H, IN]     f32 VMEM  (PyTorch nn.Linear [out_features, in_features])
    # b1_ref: [H, 1]      f32 VMEM  (column vector)
    # w2_ref: [OUT, H]    f32 VMEM
    # b2_ref: [OUT, 1]    f32 VMEM
    # o_ref : [G*OUT, TB] f32 VMEM
    hid, n_in = w1_ref.shape
    n_out = w2_ref.shape[0]
    groups = x_ref.shape[0] // n_in

    w1 = w1_ref[...]          # [H, IN]   (tiny, resident; constant block index)
    b1 = b1_ref[...]          # [H, 1]
    w2 = w2_ref[...]          # [OUT, H]
    b2 = b2_ref[...]          # [OUT, 1]

    out_rows = []
    for g in range(groups):
        # Layer 1: h = relu(W1 @ x_g + b1) as VPU outer-product broadcasts.
        h = w1[:, 0:1] * x_ref[pl.ds(g * n_in, 1), :]                 # [H, TB]
        for k in range(1, n_in):
            h = h + w1[:, k:k + 1] * x_ref[pl.ds(g * n_in + k, 1), :]
        h = jnp.maximum(h + b1, 0.0)

        # Layer 2: y = relu(W2 @ h + b2)
        y = w2[:, 0:1] * h[0:1, :]                                    # [OUT, TB]
        for j in range(1, hid):
            y = y + w2[:, j:j + 1] * h[j:j + 1, :]
        y = jnp.maximum(y + b2, 0.0)
        out_rows.append(y)

    # Single lane-dense, sublane-dense store of the whole [G*OUT, TB] tile.
    o_ref[...] = jnp.concatenate(out_rows, axis=0) if groups > 1 else out_rows[0]


def actor_forward_grouped(x_g, w1, b1, w2, b2, *, max_tb=65536):
    """Core fused Actor forward on grouped, features-major activations.

    x_g: [G*input_dim, B//G] f32 -- batch split into G groups; group g, batch
         element t, feature k lives at row g*input_dim + k, column t.
         (G == 1 is plain features-major [input_dim, B].)
    Returns [G*output_dim, B//G] f32 in the matching grouped layout.

    This entry point performs NO wrapper-side layout ops (no transpose / pad /
    slice); prefer it when the surrounding model can keep this layout.
    """
    hid, n_in = w1.shape
    n_out = w2.shape[0]
    rows_in, bg = x_g.shape
    groups = rows_in // n_in
    rows_out = groups * n_out

    max_tb = max(128, (int(max_tb) // 128) * 128)
    tb = min(max_tb, _round_up(bg, 128))
    # Keep >= 2 grid steps when there is enough work so the "parallel" batch
    # axis can shard across the 2 TensorCores of a v7x megacore.
    if _round_up(bg, 128) >= 256 and _cdiv(bg, tb) < 2:
        tb = _round_up(_cdiv(bg, 2), 128)
    n_steps = _cdiv(bg, tb)

    # VMEM budget: double-buffered, sublane-padded in/out blocks (+ headroom).
    in_pad_rows = _round_up(rows_in, 8)
    out_pad_rows = _round_up(rows_out, 8)
    block_bytes = (in_pad_rows + out_pad_rows) * tb * 4
    vmem_limit = int(min(max(2 * block_bytes + (8 << 20), 32 << 20), 56 << 20))

    flops = 2 * (n_in * hid + hid * n_out) * groups * n_steps * tb
    bytes_accessed = 4 * ((in_pad_rows + out_pad_rows) * n_steps * tb
                          + w1.size + b1.size + w2.size + b2.size)

    return pl.pallas_call(
        actor_kernel,
        out_shape=jax.ShapeDtypeStruct((rows_out, bg), jnp.float32),
        grid=(n_steps,),
        in_specs=[
            # Activation stream: blocked over batch lanes, double-buffered.
            pl.BlockSpec((rows_in, tb), lambda i: (0, i)),
            # Weights / biases: whole tiny arrays, constant block index
            # (fetched once, resident across all grid steps).
            pl.BlockSpec((hid, n_in), lambda i: (0, 0)),
            pl.BlockSpec((hid, 1), lambda i: (0, 0)),
            pl.BlockSpec((n_out, hid), lambda i: (0, 0)),
            pl.BlockSpec((n_out, 1), lambda i: (0, 0)),
        ],
        out_specs=pl.BlockSpec((rows_out, tb), lambda i: (0, i)),
        compiler_params=pltpu.CompilerParams(
            dimension_semantics=("parallel",),
            vmem_limit_bytes=vmem_limit,
        ),
        cost_estimate=pl.CostEstimate(
            flops=int(flops), transcendentals=0, bytes_accessed=int(bytes_accessed)
        ),
    )(x_g, w1, b1, w2, b2)


def actor_forward(s, w1, b1, w2, b2, *, max_tb=65536, min_pallas_batch=4096):
    """PyTorch-compatible entry: s [B, input_dim] -> [B, output_dim].

    Biases are column vectors ([H,1], [OUT,1]); reshape raw nn.Linear biases
    with `b[:, None]` before passing.  For small B a fused plain-JAX graph is
    used (kernel launch + pipeline prologue would dominate); for large B the
    batch is packed into a sublane/lane-dense grouped layout with ONE layout
    copy in and one out (no pad, no slice), then the Pallas kernel runs.
    """
    B, n_in = s.shape
    n_out = w2.shape[0]

    if B < min_pallas_batch:
        h = jnp.maximum(s @ w1.T + b1[:, 0], 0.0)
        return jnp.maximum(h @ w2.T + b2[:, 0], 0.0)

    # Largest group count (dividing B) that fills the 8 input sublanes.
    groups = max(1, 8 // max(1, n_in))
    while groups > 1 and B % groups != 0:
        groups //= 2
    bg = B // groups

    x_g = s.reshape(groups, bg, n_in).transpose(0, 2, 1).reshape(groups * n_in, bg)
    o_g = actor_forward_grouped(x_g, w1, b1, w2, b2, max_tb=max_tb)
    return o_g.reshape(groups, n_out, bg).transpose(0, 2, 1).reshape(B, n_out)


def init_actor_params(key, input_dim=2, output_dim=4):
    """Matches Actor._initialize_weights: weight ~ N(1.0, 1.0), bias = 0.

    Weights use PyTorch nn.Linear layout [out_features, in_features]; biases are
    stored as column vectors for direct broadcasting inside the kernel.
    """
    k1, k2 = jax.random.split(key)
    w1 = jax.random.normal(k1, (3, input_dim), dtype=jnp.float32) * 1.0 + 1.0
    b1 = jnp.zeros((3, 1), dtype=jnp.float32)
    w2 = jax.random.normal(k2, (output_dim, 3), dtype=jnp.float32) * 1.0 + 1.0
    b2 = jnp.zeros((output_dim, 1), dtype=jnp.float32)
    return w1, b1, w2, b2


if __name__ == "__main__":
    input_dim, output_dim = 2, 4
    key = jax.random.PRNGKey(0)
    k_param, k1, k2, k3 = jax.random.split(key, 4)
    w1, b1, w2, b2 = init_actor_params(k_param, input_dim, output_dim)

    def reference(s):
        h = jnp.maximum(s @ w1.T + b1[:, 0], 0.0)
        return jnp.maximum(h @ w2.T + b2[:, 0], 0.0)

    # 1) Module-shaped input [1, input_dim]: small-batch plain-JAX fallback path.
    s1 = jax.random.normal(k1, (1, input_dim), dtype=jnp.float32)
    o1 = jax.block_until_ready(actor_forward(s1, w1, b1, w2, b2))
    assert o1.shape == (1, output_dim)
    assert jnp.allclose(o1, reference(s1), atol=1e-5, rtol=1e-5)

    # 2) Pallas path (forced): B=512 -> 4 groups x 128 lanes, exact tiles, grid=(1,).
    s2 = jax.random.normal(k2, (512, input_dim), dtype=jnp.float32)
    o2 = jax.block_until_ready(actor_forward(s2, w1, b1, w2, b2, min_pallas_batch=0))
    assert o2.shape == (512, output_dim)
    assert jnp.allclose(o2, reference(s2), atol=1e-5, rtol=1e-5)

    # 3) Pallas path (forced): B=640 -> 4 groups x 160 lanes -> tb=128, grid=(2,)
    #    with a ragged (masked) last lane block — exercises the no-pad/no-slice path.
    s3 = jax.random.normal(k3, (640, input_dim), dtype=jnp.float32)
    o3 = jax.block_until_ready(actor_forward(s3, w1, b1, w2, b2, min_pallas_batch=0))
    assert o3.shape == (640, output_dim)
    assert jnp.allclose(o3, reference(s3), atol=1e-5, rtol=1e-5)

    print("KERNEL_OK")
</pallas_src>

<mosaic_0001>
module attributes {stable_mosaic.version = 11 : i64} {
  func.func @actor_kernel(%arg0: i32, %arg1: memref<8x128xf32, #tpu.memory_space<vmem>>, %arg2: memref<3x2xf32, #tpu.memory_space<vmem>>, %arg3: memref<3x1xf32, #tpu.memory_space<vmem>>, %arg4: memref<4x3xf32, #tpu.memory_space<vmem>>, %arg5: memref<4x1xf32, #tpu.memory_space<vmem>>, %arg6: memref<16x128xf32, #tpu.memory_space<vmem>>) attributes {dimension_semantics = [#tpu.dimension_semantics<parallel>], iteration_bounds = array<i64: 1>, scalar_prefetch = 0 : i64, scratch_operands = 0 : i64, tpu.core_type = #tpu.core_type<tc>, window_params = [{transform_indices = @transform_0, window_bounds = array<i64: 8, 128>}, {pipeline_mode = #tpu.pipeline_mode<synchronous>, transform_indices = @transform_1, window_bounds = array<i64: 3, 2>}, {pipeline_mode = #tpu.pipeline_mode<synchronous>, transform_indices = @transform_2, window_bounds = array<i64: 3, 1>}, {pipeline_mode = #tpu.pipeline_mode<synchronous>, transform_indices = @transform_3, window_bounds = array<i64: 4, 3>}, {pipeline_mode = #tpu.pipeline_mode<synchronous>, transform_indices = @transform_4, window_bounds = array<i64: 4, 1>}, {transform_indices = @transform_5, window_bounds = array<i64: 16, 128>}]} {
    %c0 = arith.constant 0 : index
    %c0_0 = arith.constant 0 : index
    %0 = vector.load %arg2[%c0, %c0_0] : memref<3x2xf32, #tpu.memory_space<vmem>>, vector<3x2xf32>
    %c0_1 = arith.constant 0 : index
    %c0_2 = arith.constant 0 : index
    %1 = vector.load %arg3[%c0_1, %c0_2] : memref<3x1xf32, #tpu.memory_space<vmem>>, vector<3x1xf32>
    %c0_3 = arith.constant 0 : index
    %c0_4 = arith.constant 0 : index
    %2 = vector.load %arg4[%c0_3, %c0_4] : memref<4x3xf32, #tpu.memory_space<vmem>>, vector<4x3xf32>
    %c0_5 = arith.constant 0 : index
    %c0_6 = arith.constant 0 : index
    %3 = vector.load %arg5[%c0_5, %c0_6] : memref<4x1xf32, #tpu.memory_space<vmem>>, vector<4x1xf32>
    %4 = vector.extract_strided_slice %0 {offsets = [0, 0], sizes = [3, 1], strides = [1, 1]} : vector<3x2xf32> to vector<3x1xf32>
    %c0_7 = arith.constant 0 : index
    %c0_8 = arith.constant 0 : index
    %5 = vector.load %arg1[%c0_7, %c0_8] : memref<8x128xf32, #tpu.memory_space<vmem>>, vector<1x128xf32>
    %6 = vector.broadcast %4 : vector<3x1xf32> to vector<3x128xf32>
    %7 = vector.broadcast %5 : vector<1x128xf32> to vector<3x128xf32>
    %8 = arith.mulf %6, %7 : vector<3x128xf32>
    %9 = vector.extract_strided_slice %0 {offsets = [0, 1], sizes = [3, 1], strides = [1, 1]} : vector<3x2xf32> to vector<3x1xf32>
    %c1 = arith.constant 1 : index
    %c0_9 = arith.constant 0 : index
    %10 = vector.load %arg1[%c1, %c0_9] : memref<8x128xf32, #tpu.memory_space<vmem>>, vector<1x128xf32>
    %11 = vector.broadcast %9 : vector<3x1xf32> to vector<3x128xf32>
    %12 = vector.broadcast %10 : vector<1x128xf32> to vector<3x128xf32>
    %13 = arith.mulf %11, %12 : vector<3x128xf32>
    %14 = arith.addf %8, %13 : vector<3x128xf32>
    %15 = vector.broadcast %1 : vector<3x1xf32> to vector<3x128xf32>
    %16 = arith.addf %14, %15 : vector<3x128xf32>
    %cst = arith.constant 0.000000e+00 : f32
    %17 = vector.broadcast %cst : f32 to vector<3x128xf32>
    %18 = arith.maximumf %16, %17 : vector<3x128xf32>
    %19 = vector.extract_strided_slice %2 {offsets = [0, 0], sizes = [4, 1], strides = [1, 1]} : vector<4x3xf32> to vector<4x1xf32>
    %20 = vector.extract_strided_slice %18 {offsets = [0, 0], sizes = [1, 128], strides = [1, 1]} : vector<3x128xf32> to vector<1x128xf32>
    %21 = vector.broadcast %19 : vector<4x1xf32> to vector<4x128xf32>
    %22 = vector.broadcast %20 : vector<1x128xf32> to vector<4x128xf32>
    %23 = arith.mulf %21, %22 : vector<4x128xf32>
    %24 = vector.extract_strided_slice %2 {offsets = [0, 1], sizes = [4, 1], strides = [1, 1]} : vector<4x3xf32> to vector<4x1xf32>
    %25 = vector.extract_strided_slice %18 {offsets = [1, 0], sizes = [1, 128], strides = [1, 1]} : vector<3x128xf32> to vector<1x128xf32>
    %26 = vector.broadcast %24 : vector<4x1xf32> to vector<4x128xf32>
    %27 = vector.broadcast %25 : vector<1x128xf32> to vector<4x128xf32>
    %28 = arith.mulf %26, %27 : vector<4x128xf32>
    %29 = arith.addf %23, %28 : vector<4x128xf32>
    %30 = vector.extract_strided_slice %2 {offsets = [0, 2], sizes = [4, 1], strides = [1, 1]} : vector<4x3xf32> to vector<4x1xf32>
    %31 = vector.extract_strided_slice %18 {offsets = [2, 0], sizes = [1, 128], strides = [1, 1]} : vector<3x128xf32> to vector<1x128xf32>
    %32 = vector.broadcast %30 : vector<4x1xf32> to vector<4x128xf32>
    %33 = vector.broadcast %31 : vector<1x128xf32> to vector<4x128xf32>
    %34 = arith.mulf %32, %33 : vector<4x128xf32>
    %35 = arith.addf %29, %34 : vector<4x128xf32>
    %36 = vector.broadcast %3 : vector<4x1xf32> to vector<4x128xf32>
    %37 = arith.addf %35, %36 : vector<4x128xf32>
    %cst_10 = arith.constant 0.000000e+00 : f32
    %38 = vector.broadcast %cst_10 : f32 to vector<4x128xf32>
    %39 = arith.maximumf %37, %38 : vector<4x128xf32>
    %40 = vector.extract_strided_slice %0 {offsets = [0, 0], sizes = [3, 1], strides = [1, 1]} : vector<3x2xf32> to vector<3x1xf32>
    %c2 = arith.constant 2 : index
    %c0_11 = arith.constant 0 : index
    %41 = vector.load %arg1[%c2, %c0_11] : memref<8x128xf32, #tpu.memory_space<vmem>>, vector<1x128xf32>
    %42 = vector.broadcast %40 : vector<3x1xf32> to vector<3x128xf32>
    %43 = vector.broadcast %41 : vector<1x128xf32> to vector<3x128xf32>
    %44 = arith.mulf %42, %43 : vector<3x128xf32>
    %45 = vector.extract_strided_slice %0 {offsets = [0, 1], sizes = [3, 1], strides = [1, 1]} : vector<3x2xf32> to vector<3x1xf32>
    %c3 = arith.constant 3 : index
    %c0_12 = arith.constant 0 : index
    %46 = vector.load %arg1[%c3, %c0_12] : memref<8x128xf32, #tpu.memory_space<vmem>>, vector<1x128xf32>
    %47 = vector.broadcast %45 : vector<3x1xf32> to vector<3x128xf32>
    %48 = vector.broadcast %46 : vector<1x128xf32> to vector<3x128xf32>
    %49 = arith.mulf %47, %48 : vector<3x128xf32>
    %50 = arith.addf %44, %49 : vector<3x128xf32>
    %51 = vector.broadcast %1 : vector<3x1xf32> to vector<3x128xf32>
    %52 = arith.addf %50, %51 : vector<3x128xf32>
    %cst_13 = arith.constant 0.000000e+00 : f32
    %53 = vector.broadcast %cst_13 : f32 to vector<3x128xf32>
    %54 = arith.maximumf %52, %53 : vector<3x128xf32>
    %55 = vector.extract_strided_slice %2 {offsets = [0, 0], sizes = [4, 1], strides = [1, 1]} : vector<4x3xf32> to vector<4x1xf32>
    %56 = vector.extract_strided_slice %54 {offsets = [0, 0], sizes = [1, 128], strides = [1, 1]} : vector<3x128xf32> to vector<1x128xf32>
    %57 = vector.broadcast %55 : vector<4x1xf32> to vector<4x128xf32>
    %58 = vector.broadcast %56 : vector<1x128xf32> to vector<4x128xf32>
    %59 = arith.mulf %57, %58 : vector<4x128xf32>
    %60 = vector.extract_strided_slice %2 {offsets = [0, 1], sizes = [4, 1], strides = [1, 1]} : vector<4x3xf32> to vector<4x1xf32>
    %61 = vector.extract_strided_slice %54 {offsets = [1, 0], sizes = [1, 128], strides = [1, 1]} : vector<3x128xf32> to vector<1x128xf32>
    %62 = vector.broadcast %60 : vector<4x1xf32> to vector<4x128xf32>
    %63 = vector.broadcast %61 : vector<1x128xf32> to vector<4x128xf32>
    %64 = arith.mulf %62, %63 : vector<4x128xf32>
    %65 = arith.addf %59, %64 : vector<4x128xf32>
    %66 = vector.extract_strided_slice %2 {offsets = [0, 2], sizes = [4, 1], strides = [1, 1]} : vector<4x3xf32> to vector<4x1xf32>
    %67 = vector.extract_strided_slice %54 {offsets = [2, 0], sizes = [1, 128], strides = [1, 1]} : vector<3x128xf32> to vector<1x128xf32>
    %68 = vector.broadcast %66 : vector<4x1xf32> to vector<4x128xf32>
    %69 = vector.broadcast %67 : vector<1x128xf32> to vector<4x128xf32>
    %70 = arith.mulf %68, %69 : vector<4x128xf32>
    %71 = arith.addf %65, %70 : vector<4x128xf32>
    %72 = vector.broadcast %3 : vector<4x1xf32> to vector<4x128xf32>
    %73 = arith.addf %71, %72 : vector<4x128xf32>
    %cst_14 = arith.constant 0.000000e+00 : f32
    %74 = vector.broadcast %cst_14 : f32 to vector<4x128xf32>
    %75 = arith.maximumf %73, %74 : vector<4x128xf32>
    %76 = vector.extract_strided_slice %0 {offsets = [0, 0], sizes = [3, 1], strides = [1, 1]} : vector<3x2xf32> to vector<3x1xf32>
    %c4 = arith.constant 4 : index
    %c0_15 = arith.constant 0 : index
    %77 = vector.load %arg1[%c4, %c0_15] : memref<8x128xf32, #tpu.memory_space<vmem>>, vector<1x128xf32>
    %78 = vector.broadcast %76 : vector<3x1xf32> to vector<3x128xf32>
    %79 = vector.broadcast %77 : vector<1x128xf32> to vector<3x128xf32>
    %80 = arith.mulf %78, %79 : vector<3x128xf32>
    %81 = vector.extract_strided_slice %0 {offsets = [0, 1], sizes = [3, 1], strides = [1, 1]} : vector<3x2xf32> to vector<3x1xf32>
    %c5 = arith.constant 5 : index
    %c0_16 = arith.constant 0 : index
    %82 = vector.load %arg1[%c5, %c0_16] : memref<8x128xf32, #tpu.memory_space<vmem>>, vector<1x128xf32>
    %83 = vector.broadcast %81 : vector<3x1xf32> to vector<3x128xf32>
    %84 = vector.broadcast %82 : vector<1x128xf32> to vector<3x128xf32>
    %85 = arith.mulf %83, %84 : vector<3x128xf32>
    %86 = arith.addf %80, %85 : vector<3x128xf32>
    %87 = vector.broadcast %1 : vector<3x1xf32> to vector<3x128xf32>
    %88 = arith.addf %86, %87 : vector<3x128xf32>
    %cst_17 = arith.constant 0.000000e+00 : f32
    %89 = vector.broadcast %cst_17 : f32 to vector<3x128xf32>
    %90 = arith.maximumf %88, %89 : vector<3x128xf32>
    %91 = vector.extract_strided_slice %2 {offsets = [0, 0], sizes = [4, 1], strides = [1, 1]} : vector<4x3xf32> to vector<4x1xf32>
    %92 = vector.extract_strided_slice %90 {offsets = [0, 0], sizes = [1, 128], strides = [1, 1]} : vector<3x128xf32> to vector<1x128xf32>
    %93 = vector.broadcast %91 : vector<4x1xf32> to vector<4x128xf32>
    %94 = vector.broadcast %92 : vector<1x128xf32> to vector<4x128xf32>
    %95 = arith.mulf %93, %94 : vector<4x128xf32>
    %96 = vector.extract_strided_slice %2 {offsets = [0, 1], sizes = [4, 1], strides = [1, 1]} : vector<4x3xf32> to vector<4x1xf32>
    %97 = vector.extract_strided_slice %90 {offsets = [1, 0], sizes = [1, 128], strides = [1, 1]} : vector<3x128xf32> to vector<1x128xf32>
    %98 = vector.broadcast %96 : vector<4x1xf32> to vector<4x128xf32>
    %99 = vector.broadcast %97 : vector<1x128xf32> to vector<4x128xf32>
    %100 = arith.mulf %98, %99 : vector<4x128xf32>
    %101 = arith.addf %95, %100 : vector<4x128xf32>
    %102 = vector.extract_strided_slice %2 {offsets = [0, 2], sizes = [4, 1], strides = [1, 1]} : vector<4x3xf32> to vector<4x1xf32>
    %103 = vector.extract_strided_slice %90 {offsets = [2, 0], sizes = [1, 128], strides = [1, 1]} : vector<3x128xf32> to vector<1x128xf32>
    %104 = vector.broadcast %102 : vector<4x1xf32> to vector<4x128xf32>
    %105 = vector.broadcast %103 : vector<1x128xf32> to vector<4x128xf32>
    %106 = arith.mulf %104, %105 : vector<4x128xf32>
    %107 = arith.addf %101, %106 : vector<4x128xf32>
    %108 = vector.broadcast %3 : vector<4x1xf32> to vector<4x128xf32>
    %109 = arith.addf %107, %108 : vector<4x128xf32>
    %cst_18 = arith.constant 0.000000e+00 : f32
    %110 = vector.broadcast %cst_18 : f32 to vector<4x128xf32>
    %111 = arith.maximumf %109, %110 : vector<4x128xf32>
    %112 = vector.extract_strided_slice %0 {offsets = [0, 0], sizes = [3, 1], strides = [1, 1]} : vector<3x2xf32> to vector<3x1xf32>
    %c6 = arith.constant 6 : index
    %c0_19 = arith.constant 0 : index
    %113 = vector.load %arg1[%c6, %c0_19] : memref<8x128xf32, #tpu.memory_space<vmem>>, vector<1x128xf32>
    %114 = vector.broadcast %112 : vector<3x1xf32> to vector<3x128xf32>
    %115 = vector.broadcast %113 : vector<1x128xf32> to vector<3x128xf32>
    %116 = arith.mulf %114, %115 : vector<3x128xf32>
    %117 = vector.extract_strided_slice %0 {offsets = [0, 1], sizes = [3, 1], strides = [1, 1]} : vector<3x2xf32> to vector<3x1xf32>
    %c7 = arith.constant 7 : index
    %c0_20 = arith.constant 0 : index
    %118 = vector.load %arg1[%c7, %c0_20] : memref<8x128xf32, #tpu.memory_space<vmem>>, vector<1x128xf32>
    %119 = vector.broadcast %117 : vector<3x1xf32> to vector<3x128xf32>
    %120 = vector.broadcast %118 : vector<1x128xf32> to vector<3x128xf32>
    %121 = arith.mulf %119, %120 : vector<3x128xf32>
    %122 = arith.addf %116, %121 : vector<3x128xf32>
    %123 = vector.broadcast %1 : vector<3x1xf32> to vector<3x128xf32>
    %124 = arith.addf %122, %123 : vector<3x128xf32>
    %cst_21 = arith.constant 0.000000e+00 : f32
    %125 = vector.broadcast %cst_21 : f32 to vector<3x128xf32>
    %126 = arith.maximumf %124, %125 : vector<3x128xf32>
    %127 = vector.extract_strided_slice %2 {offsets = [0, 0], sizes = [4, 1], strides = [1, 1]} : vector<4x3xf32> to vector<4x1xf32>
    %128 = vector.extract_strided_slice %126 {offsets = [0, 0], sizes = [1, 128], strides = [1, 1]} : vector<3x128xf32> to vector<1x128xf32>
    %129 = vector.broadcast %127 : vector<4x1xf32> to vector<4x128xf32>
    %130 = vector.broadcast %128 : vector<1x128xf32> to vector<4x128xf32>
    %131 = arith.mulf %129, %130 : vector<4x128xf32>
    %132 = vector.extract_strided_slice %2 {offsets = [0, 1], sizes = [4, 1], strides = [1, 1]} : vector<4x3xf32> to vector<4x1xf32>
    %133 = vector.extract_strided_slice %126 {offsets = [1, 0], sizes = [1, 128], strides = [1, 1]} : vector<3x128xf32> to vector<1x128xf32>
    %134 = vector.broadcast %132 : vector<4x1xf32> to vector<4x128xf32>
    %135 = vector.broadcast %133 : vector<1x128xf32> to vector<4x128xf32>
    %136 = arith.mulf %134, %135 : vector<4x128xf32>
    %137 = arith.addf %131, %136 : vector<4x128xf32>
    %138 = vector.extract_strided_slice %2 {offsets = [0, 2], sizes = [4, 1], strides = [1, 1]} : vector<4x3xf32> to vector<4x1xf32>
    %139 = vector.extract_strided_slice %126 {offsets = [2, 0], sizes = [1, 128], strides = [1, 1]} : vector<3x128xf32> to vector<1x128xf32>
    %140 = vector.broadcast %138 : vector<4x1xf32> to vector<4x128xf32>
    %141 = vector.broadcast %139 : vector<1x128xf32> to vector<4x128xf32>
    %142 = arith.mulf %140, %141 : vector<4x128xf32>
    %143 = arith.addf %137, %142 : vector<4x128xf32>
    %144 = vector.broadcast %3 : vector<4x1xf32> to vector<4x128xf32>
    %145 = arith.addf %143, %144 : vector<4x128xf32>
    %cst_22 = arith.constant 0.000000e+00 : f32
    %146 = vector.broadcast %cst_22 : f32 to vector<4x128xf32>
    %147 = arith.maximumf %145, %146 : vector<4x128xf32>
    %148 = tpu.concatenate %39, %75, %111, %147 in 0 : vector<4x128xf32>, vector<4x128xf32>, vector<4x128xf32>, vector<4x128xf32> -> vector<16x128xf32>
    %c0_23 = arith.constant 0 : index
    %c0_24 = arith.constant 0 : index
    %149 = vector.load %arg6[%c0_23, %c0_24] : memref<16x128xf32, #tpu.memory_space<vmem>>, vector<16x128xf32>
    tpu.vector_store %arg6[%c0_23, %c0_24], %148 {strides = array<i32>} : memref<16x128xf32, #tpu.memory_space<vmem>>, vector<16x128xf32>,
    return
  }
  func.func @transform_0(%arg0: i32) -> (i32, i32) {
    %c0_i32 = arith.constant 0 : i32
    %c0_i32_0 = arith.constant 0 : i32
    return %c0_i32, %arg0 : i32, i32
  }
  func.func @transform_1(%arg0: i32) -> (i32, i32) {
    %c0_i32 = arith.constant 0 : i32
    %c0_i32_0 = arith.constant 0 : i32
    %c0_i32_1 = arith.constant 0 : i32
    return %c0_i32, %c0_i32_0 : i32, i32
  }
  func.func @transform_2(%arg0: i32) -> (i32, i32) {
    %c0_i32 = arith.constant 0 : i32
    %c0_i32_0 = arith.constant 0 : i32
    %c0_i32_1 = arith.constant 0 : i32
    return %c0_i32, %c0_i32_0 : i32, i32
  }
  func.func @transform_3(%arg0: i32) -> (i32, i32) {
    %c0_i32 = arith.constant 0 : i32
    %c0_i32_0 = arith.constant 0 : i32
    %c0_i32_1 = arith.constant 0 : i32
    return %c0_i32, %c0_i32_0 : i32, i32
  }
  func.func @transform_4(%arg0: i32) -> (i32, i32) {
    %c0_i32 = arith.constant 0 : i32
    %c0_i32_0 = arith.constant 0 : i32
    %c0_i32_1 = arith.constant 0 : i32
    return %c0_i32, %c0_i32_0 : i32, i32
  }
  func.func @transform_5(%arg0: i32) -> (i32, i32) {
    %c0_i32 = arith.constant 0 : i32
    %c0_i32_0 = arith.constant 0 : i32
    return %c0_i32, %arg0 : i32, i32
  }
}

</mosaic_0001>

<llo_original>
// kernel: tpu_custom_call.1
$region0: #{tpu_custom_call.1}
  #allocation0 [shape = 'u32[]', space=smem, size = 0x4, offset = 0x4, fixed_abs, tag = 'smem constant byte address 0x4 - core index']
  #allocation1 [shape = 'u32[72,128]{1,0:T(1,128)}', space=vmem, size = 0x9000, scoped, tag = 'internal scratch']
  %s0 = inlined_call_operand.vmem [shape: f32[8,128], index: 0, kind: input, shape index: {}]
  %s1 = inlined_call_operand.vmem [shape: f32[3,2], index: 1, kind: input, shape index: {}]
  %s2 = inlined_call_operand.vmem [shape: f32[3,1], index: 2, kind: input, shape index: {}]
  %s3 = inlined_call_operand.vmem [shape: f32[4,3], index: 3, kind: input, shape index: {}]
  %s4 = inlined_call_operand.vmem [shape: f32[4,1], index: 4, kind: input, shape index: {}]
  %s5 = inlined_call_operand.hbm [shape: f32[16,128], index: 5, kind: output, shape index: {}]
  %s6 = sld [smem:[#allocation0]]
  $region30: #{tpu_custom_call.1} parent=0
    _
  %s8 = ssub.s32 1, %s6
  %s9 = scalar_select 0, %s8, %s6
  $region1: #{tpu_custom_call.1} parent=0
    #allocation2 [shape = 'u8[8192]{0}', space=vmem, size = 0x2000, scoped, tag = 'output window, operand 0, single buffered']
    #allocation3 [shape = 's32[1]{0}', space=sflag, size = 0x4, scoped, tag = 'scoped memory for tpu_custom_call.1']
    %10 = vsyncpa [#allocation3], 0
    // Predicated region
    $region2: #{tpu_custom_call.1} parent=1 // pred_check
      _
    $region3: #{tpu_custom_call.1} parent=1 // pred_check_branch
      %12 = sbr.rel (0) target = $region5
    $region4: #{tpu_custom_call.1} parent=1 // pred_region
      _
    $region5: #{tpu_custom_call.1} parent=1 // pred_fallthru
      _
    // Predicated region
    $region6: #{tpu_custom_call.1} parent=1 // pred_check
      _
    $region7: #{tpu_custom_call.1} parent=1 // pred_check_branch
      %14 = sbr.rel (0) target = $region9
    $region8: #{tpu_custom_call.1} parent=1 // pred_region
      _
    $region9: #{tpu_custom_call.1} parent=1 // pred_fallthru
      _
    // Predicated region
    $region10: #{tpu_custom_call.1} parent=1 // pred_check
      _
    $region11: #{tpu_custom_call.1} parent=1 // pred_check_branch
      %16 = sbr.rel (0) target = $region13
    $region12: #{tpu_custom_call.1} parent=1 // pred_region
      _
    $region13: #{tpu_custom_call.1} parent=1 // pred_fallthru
      _
    // Predicated region
    $region14: #{tpu_custom_call.1} parent=1 // pred_check
      _
    $region15: #{tpu_custom_call.1} parent=1 // pred_check_branch
      %18 = sbr.rel (0) target = $region17
    $region16: #{tpu_custom_call.1} parent=1 // pred_region
      _
    $region17: #{tpu_custom_call.1} parent=1 // pred_fallthru
      _
    // Predicated region
    $region18: #{tpu_custom_call.1} parent=1 // pred_check
      _
    $region19: #{tpu_custom_call.1} parent=1 // pred_check_branch
      %20 = sbr.rel (0) target = $region21
    $region20: #{tpu_custom_call.1} parent=1 // pred_region
      _
    $region21: #{tpu_custom_call.1} parent=1 // pred_fallthru
      _
    %v21 = vld [vmem:[%s1] sm:$0x7]
    %v22 = vld [vmem:[%s2] sm:$0x7]
    %v23 = vld [vmem:[%s3] sm:$0xf]
    %v24 = vld [vmem:[%s4] sm:$0xf]
    %v25 = vld [vmem:[%s0] sm:$0x1]
    %27 = vset.pattern.permute.xlu0 0
    %28 = vperm.xlu0 %27, %v21
    %v29 = vpop.permute.xlu0 %28
    %v31 = vperm.slane %v25, 0
    %v32 = vmul.f32 %v29, %v31
    %v33 = vld [vmem:[%s0 + $0x1] sm:$0x1]
    %34 = vset.pattern.permute.xlu0 1
    %35 = vperm.xlu0 %34, %v21
    %v36 = vpop.permute.xlu0 %35
    %v38 = vperm.slane %v33, 0
    %v39 = vmul.f32 %v36, %v38
    %v40 = vadd.f32 %v32, %v39
    %42 = vset.pattern.permute.xlu0 0
    %43 = vperm.xlu0 %42, %v22
    %v44 = vpop.permute.xlu0 %43
    %v46 = vadd.f32 %v40, %v44
    %v47 = vmax.f32 %v46, 0.0
    %49 = vset.pattern.permute.xlu0 0
    %50 = vperm.xlu0 %49, %v23
    %v51 = vpop.permute.xlu0 %50
    %v53 = vperm.slane %v47, 0
    %v54 = vmul.f32 %v51, %v53
    %55 = vset.pattern.permute.xlu0 1
    %56 = vperm.xlu0 %55, %v23
    %v57 = vpop.permute.xlu0 %56
    %v59 = vperm.slane %v47, 1
    %v60 = vmul.f32 %v57, %v59
    %v61 = vadd.f32 %v54, %v60
    %62 = vset.pattern.permute.xlu0 2
    %63 = vperm.xlu0 %62, %v23
    %v64 = vpop.permute.xlu0 %63
    %v66 = vperm.slane %v47, 2
    %v67 = vmul.f32 %v64, %v66
    %v68 = vadd.f32 %v61, %v67
    %70 = vset.pattern.permute.xlu0 0
    %71 = vperm.xlu0 %70, %v24
    %v72 = vpop.permute.xlu0 %71
    %v74 = vadd.f32 %v68, %v72
    %v75 = vmax.f32 %v74, 0.0
    %v76 = vld [vmem:[%s0 + $0x2] sm:$0x1]
    %v77 = vperm.slane %v76, 0
    %v78 = vmul.f32 %v29, %v77
    %v79 = vld [vmem:[%s0 + $0x3] sm:$0x1]
    %v80 = vperm.slane %v79, 0
    %v81 = vmul.f32 %v36, %v80
    %v82 = vadd.f32 %v78, %v81
    %v83 = vadd.f32 %v82, %v44
    %v84 = vmax.f32 %v83, 0.0
    %v85 = vperm.slane %v84, 0
    %v86 = vmul.f32 %v51, %v85
    %v87 = vperm.slane %v84, 1
    %v88 = vmul.f32 %v57, %v87
    %v89 = vadd.f32 %v86, %v88
    %v90 = vperm.slane %v84, 2
    %v91 = vmul.f32 %v64, %v90
    %v92 = vadd.f32 %v89, %v91
    %v93 = vadd.f32 %v92, %v72
    %v94 = vmax.f32 %v93, 0.0
    %v95 = vld [vmem:[%s0 + $0x4] sm:$0x1]
    %v96 = vperm.slane %v95, 0
    %v97 = vmul.f32 %v29, %v96
    %v98 = vld [vmem:[%s0 + $0x5] sm:$0x1]
    %v99 = vperm.slane %v98, 0
    %v100 = vmul.f32 %v36, %v99
    %v101 = vadd.f32 %v97, %v100
    %v102 = vadd.f32 %v101, %v44
    %v103 = vmax.f32 %v102, 0.0
    %v104 = vperm.slane %v103, 0
    %v105 = vmul.f32 %v51, %v104
    %v106 = vperm.slane %v103, 1
    %v107 = vmul.f32 %v57, %v106
    %v108 = vadd.f32 %v105, %v107
    %v109 = vperm.slane %v103, 2
    %v110 = vmul.f32 %v64, %v109
    %v111 = vadd.f32 %v108, %v110
    %v112 = vadd.f32 %v111, %v72
    %v113 = vmax.f32 %v112, 0.0
    %v114 = vld [vmem:[%s0 + $0x6] sm:$0x1]
    %v115 = vperm.slane %v114, 0
    %v116 = vmul.f32 %v29, %v115
    %v117 = vld [vmem:[%s0 + $0x7] sm:$0x1]
    %v118 = vperm.slane %v117, 0
    %v119 = vmul.f32 %v36, %v118
    %v120 = vadd.f32 %v116, %v119
    %v121 = vadd.f32 %v120, %v44
    %v122 = vmax.f32 %v121, 0.0
    %v123 = vperm.slane %v122, 0
    %v124 = vmul.f32 %v51, %v123
    %v125 = vperm.slane %v122, 1
    %v126 = vmul.f32 %v57, %v125
    %v127 = vadd.f32 %v124, %v126
    %v128 = vperm.slane %v122, 2
    %v129 = vmul.f32 %v64, %v128
    %v130 = vadd.f32 %v127, %v129
    %v131 = vadd.f32 %v130, %v72
    %v132 = vmax.f32 %v131, 0.0
    %v134 = vrot.slane %v94, 4
    %v137 = vrot.slane %v132, 4
    %vm139 = vcmask 1043456
    %v140 = vsel %vm139, %v75, %v134
    %v141 = vsel %vm139, %v113, %v137
    %142 = vst [vmem:[#allocation2] sm:$0xff] %v140
    %143 = vst [vmem:[#allocation2 + $0x8] sm:$0xff] %v141
    // Predicated region
    $region22: #{tpu_custom_call.1} parent=1 // pred_check
      _
    $region23: #{tpu_custom_call.1} parent=1 // pred_check_branch
      %145 = sbr.rel (0) target = $region25
    $region24: #{tpu_custom_call.1} parent=1 // pred_region
      %147 = vsyncadd [#allocation3], 0
      %s148 = sshll.u32 [#allocation2], 4
      %s149 = int_to_ptr.vmem [resolvable:$true] %s148
      %s150 = sshll.u32 %s5, 4
      %s151 = int_to_ptr.hbm [resolvable:$true] %s150
      %156 = dma.vmem_to_hbm [thread:$0]  %s149, 256, %s151, [#allocation3], 128, 128, 8
    $region25: #{tpu_custom_call.1} parent=1 // pred_fallthru
      _
    // Predicated region
    $region26: #{tpu_custom_call.1} parent=1 // pred_check
      _
    $region27: #{tpu_custom_call.1} parent=1 // pred_check_branch
      %158 = sbr.rel (0) target = $region29
    $region28: #{tpu_custom_call.1} parent=1 // pred_region
      %160 = dma.done [#allocation3], 256
    $region29: #{tpu_custom_call.1} parent=1 // pred_fallthru
      _
    %161 = vsyncpa [#allocation3], 1

</llo_original>
